<compile_context>
chip_gen: v5e
topology: v5e:2x2
jax: 0.10.0
libtpu: 0.0.40
codegen_flags: <defaults>
</compile_context>

<pallas_src>
import functools

import jax
import jax.numpy as jnp
from jax.experimental import pallas as pl
from jax.experimental.pallas import tpu as pltpu


def _round_up(n: int, m: int) -> int:
    return ((n + m - 1) // m) * m


def _mlp_kernel(x_ref, w1_ref, b1_ref, w2_ref, b2_ref, o_ref):
    # Hidden layer: matmul on MXU (f32 accumulate), bias add + ReLU on VPU.
    h = jnp.dot(x_ref[...], w1_ref[...], preferred_element_type=jnp.float32)
    h = jnp.maximum(h + b1_ref[...].astype(jnp.float32), 0.0)
    # Output layer (output lane dim is padded to a multiple of 128).
    out = jnp.dot(h, w2_ref[...].astype(jnp.float32),
                  preferred_element_type=jnp.float32)
    out = out + b2_ref[...].astype(jnp.float32)
    o_ref[...] = out.astype(o_ref.dtype)


def _cost_estimate(batch, in_f, hid, out_pad, bytes_accessed):
    flops = 2 * batch * (in_f * hid + hid * out_pad)
    return pl.CostEstimate(flops=flops, transcendentals=0,
                           bytes_accessed=bytes_accessed)


@functools.partial(jax.jit, static_argnames=("batch_tile",))
def linear_qnet_forward(x, w1, b1, w2, b2, *, batch_tile=512):
    """Forward pass.

    x : [B, in], w1 : [in, hid], b1 : [1, hid],
    w2 : [hid, out], b2 : [1, out]  ->  [B, out]
    """
    B, in_f = x.shape
    hid = w1.shape[1]
    out_f = w2.shape[1]
    dtype = x.dtype
    itemsize = jnp.dtype(dtype).itemsize

    # Lane-dense output: pad the 4-wide output dim up to a multiple of 128.
    out_pad = _round_up(max(out_f, 128), 128)
    w2p = jnp.pad(w2, ((0, 0), (0, out_pad - out_f)))
    b2p = jnp.pad(b2, ((0, 0), (0, out_pad - out_f)))

    if B <= batch_tile:
        # Tiny-batch / inference path: single grid point, whole arrays in
        # VMEM. Entirely launch-overhead bound; do not add a grid here.
        Bp = _round_up(B, 8)  # sublane-aligned rows
        xp = jnp.pad(x, ((0, Bp - B), (0, 0)))
        bytes_accessed = itemsize * (Bp * in_f + in_f * hid + hid
                                     + hid * out_pad + out_pad + Bp * out_pad)
        vmem_spec = pl.BlockSpec(memory_space=pltpu.MemorySpace.VMEM)
        out = pl.pallas_call(
            _mlp_kernel,
            out_shape=jax.ShapeDtypeStruct((Bp, out_pad), dtype),
            in_specs=[vmem_spec] * 5,
            out_specs=vmem_spec,
            cost_estimate=_cost_estimate(Bp, in_f, hid, out_pad,
                                         bytes_accessed),
        )(xp, w1, b1, w2p, b2p)
    else:
        # Large-batch / training path: pipeline activations over a batch grid;
        # weights and biases stay VMEM-resident (constant index_map).
        Bp = _round_up(B, batch_tile)
        xp = jnp.pad(x, ((0, Bp - B), (0, 0)))
        grid = (Bp // batch_tile,)
        bytes_accessed = itemsize * (Bp * in_f + in_f * hid + hid
                                     + hid * out_pad + out_pad + Bp * out_pad)
        out = pl.pallas_call(
            _mlp_kernel,
            out_shape=jax.ShapeDtypeStruct((Bp, out_pad), dtype),
            grid=grid,
            in_specs=[
                pl.BlockSpec((batch_tile, in_f), lambda i: (i, 0)),
                pl.BlockSpec((in_f, hid), lambda i: (0, 0)),
                pl.BlockSpec((1, hid), lambda i: (0, 0)),
                pl.BlockSpec((hid, out_pad), lambda i: (0, 0)),
                pl.BlockSpec((1, out_pad), lambda i: (0, 0)),
            ],
            out_specs=pl.BlockSpec((batch_tile, out_pad), lambda i: (i, 0)),
            compiler_params=pltpu.CompilerParams(
                # Batch axis shards across the 2 TensorCores on v7x; no-op on
                # single-TC v5e/v6e.
                dimension_semantics=("parallel",),
                # Conservative explicit limit: fits v7x's 64 MiB VMEM with
                # headroom; tiles here are well under 1 MiB double-buffered.
                vmem_limit_bytes=32 * 1024 * 1024,
            ),
            cost_estimate=_cost_estimate(Bp, in_f, hid, out_pad,
                                         bytes_accessed),
        )(xp, w1, b1, w2p, b2p)

    return out[:B, :out_f]


def init_linear_qnet_params(key, input_size, hidden_size, output_size,
                            dtype=jnp.float32):
    """Deterministic init mimicking nn.Linear default (uniform +-1/sqrt(fan_in)).

    Weights are returned already transposed to [in, out] layout.
    """
    k1, k2, k3, k4 = jax.random.split(key, 4)
    lim1 = 1.0 / (input_size ** 0.5)
    lim2 = 1.0 / (hidden_size ** 0.5)
    w1 = jax.random.uniform(k1, (input_size, hidden_size), dtype, -lim1, lim1)
    b1 = jax.random.uniform(k2, (1, hidden_size), dtype, -lim1, lim1)
    w2 = jax.random.uniform(k3, (hidden_size, output_size), dtype, -lim2, lim2)
    b2 = jax.random.uniform(k4, (1, output_size), dtype, -lim2, lim2)
    return w1, b1, w2, b2


def reference_forward(x, w1, b1, w2, b2):
    h = jnp.maximum(x @ w1 + b1, 0.0)
    return h @ w2 + b2


if __name__ == "__main__":
    input_size, hidden_size, output_size = 16, 32, 4

    key = jax.random.PRNGKey(0)
    kx, kp, kx2 = jax.random.split(key, 3)
    w1, b1, w2, b2 = init_linear_qnet_params(
        kp, input_size, hidden_size, output_size)

    # --- Small-batch (inference) path: single grid point. ---
    batch = 8
    x = jax.random.normal(kx, (batch, input_size), dtype=jnp.float32)
    out = jax.block_until_ready(linear_qnet_forward(x, w1, b1, w2, b2))
    ref = reference_forward(x, w1, b1, w2, b2)
    assert out.shape == (batch, output_size)
    assert jnp.allclose(out, ref, atol=1e-4, rtol=1e-4)

    # --- Large-batch (training) path: batch-tiled, pipelined, parallel. ---
    big_batch = 1000  # not a multiple of the 512-row tile on purpose
    xb = jax.random.normal(kx2, (big_batch, input_size), dtype=jnp.float32)
    out_big = jax.block_until_ready(linear_qnet_forward(xb, w1, b1, w2, b2))
    ref_big = reference_forward(xb, w1, b1, w2, b2)
    assert out_big.shape == (big_batch, output_size)
    assert jnp.allclose(out_big, ref_big, atol=1e-4, rtol=1e-4)

    print("KERNEL_OK")
</pallas_src>

<mosaic_0001>
module attributes {stable_mosaic.version = 11 : i64} {
  func.func @_mlp_kernel(%arg0: memref<8x16xf32, #tpu.memory_space<vmem>>, %arg1: memref<16x32xf32, #tpu.memory_space<vmem>>, %arg2: memref<1x32xf32, #tpu.memory_space<vmem>>, %arg3: memref<32x128xf32, #tpu.memory_space<vmem>>, %arg4: memref<1x128xf32, #tpu.memory_space<vmem>>, %arg5: memref<8x128xf32, #tpu.memory_space<vmem>>) attributes {dimension_semantics = [], scalar_prefetch = 0 : i64, scratch_operands = 0 : i64, tpu.core_type = #tpu.core_type<tc>} {
    %c0 = arith.constant 0 : index
    %c0_0 = arith.constant 0 : index
    %0 = vector.load %arg0[%c0, %c0_0] : memref<8x16xf32, #tpu.memory_space<vmem>>, vector<8x16xf32>
    %c0_1 = arith.constant 0 : index
    %c0_2 = arith.constant 0 : index
    %1 = vector.load %arg1[%c0_1, %c0_2] : memref<16x32xf32, #tpu.memory_space<vmem>>, vector<16x32xf32>
    %cst = arith.constant dense<0.000000e+00> : vector<8x32xf32>
    %2 = tpu.matmul %0, %1, %cst {dimension_numbers = #tpu.dot_dimension_numbers<[1], [0], [0], [1], [0, 0, 1, 1], [], []>} : vector<8x16xf32>, vector<16x32xf32>, vector<8x32xf32> -> vector<8x32xf32>
    %c0_3 = arith.constant 0 : index
    %c0_4 = arith.constant 0 : index
    %3 = vector.load %arg2[%c0_3, %c0_4] : memref<1x32xf32, #tpu.memory_space<vmem>>, vector<1x32xf32>
    %4 = vector.broadcast %3 : vector<1x32xf32> to vector<8x32xf32>
    %5 = arith.addf %2, %4 : vector<8x32xf32>
    %cst_5 = arith.constant 0.000000e+00 : f32
    %6 = vector.broadcast %cst_5 : f32 to vector<8x32xf32>
    %7 = arith.maximumf %5, %6 : vector<8x32xf32>
    %c0_6 = arith.constant 0 : index
    %c0_7 = arith.constant 0 : index
    %8 = vector.load %arg3[%c0_6, %c0_7] : memref<32x128xf32, #tpu.memory_space<vmem>>, vector<32x128xf32>
    %cst_8 = arith.constant dense<0.000000e+00> : vector<8x128xf32>
    %9 = tpu.matmul %7, %8, %cst_8 {dimension_numbers = #tpu.dot_dimension_numbers<[1], [0], [0], [1], [0, 0, 1, 1], [], []>} : vector<8x32xf32>, vector<32x128xf32>, vector<8x128xf32> -> vector<8x128xf32>
    %c0_9 = arith.constant 0 : index
    %c0_10 = arith.constant 0 : index
    %10 = vector.load %arg4[%c0_9, %c0_10] : memref<1x128xf32, #tpu.memory_space<vmem>>, vector<1x128xf32>
    %11 = vector.broadcast %10 : vector<1x128xf32> to vector<8x128xf32>
    %12 = arith.addf %9, %11 : vector<8x128xf32>
    %c0_11 = arith.constant 0 : index
    %c0_12 = arith.constant 0 : index
    %13 = vector.load %arg5[%c0_11, %c0_12] : memref<8x128xf32, #tpu.memory_space<vmem>>, vector<8x128xf32>
    tpu.vector_store %arg5[%c0_11, %c0_12], %12 {strides = array<i32>} : memref<8x128xf32, #tpu.memory_space<vmem>>, vector<8x128xf32>,
    return
  }
}

</mosaic_0001>

<llo_original>
// kernel: linear_qnet_forward.1
$region0: #{linear_qnet_forward.1}
  #allocation0 [shape = 'u32[]', space=smem, size = 0x4, offset = 0x4, fixed_abs, tag = 'smem constant byte address 0x4 - core index']
  #allocation1 [shape = 'u32[72,128]{1,0:T(1,128)}', space=vmem, size = 0x9000, scoped, tag = 'internal scratch']
  %s0 = inlined_call_operand.vmem [shape: f32[8,16], index: 0, kind: input, shape index: {}]
  %s1 = inlined_call_operand.vmem [shape: f32[16,32], index: 1, kind: input, shape index: {}]
  %s2 = inlined_call_operand.vmem [shape: f32[1,32], index: 2, kind: input, shape index: {}]
  %s3 = inlined_call_operand.vmem [shape: f32[32,128], index: 3, kind: input, shape index: {}]
  %s4 = inlined_call_operand.vmem [shape: f32[1,128], index: 4, kind: input, shape index: {}]
  %s5 = inlined_call_operand.vmem [shape: f32[8,128], index: 5, kind: output, shape index: {}]
  %s6 = sld [smem:[#allocation0]]
  $region30: #{linear_qnet_forward.1} parent=0
    _
  %s8 = ssub.s32 1, %s6
  %s9 = scalar_select 0, %s8, %s6
  // Predicated region
  $region2: #{linear_qnet_forward.1} parent=0 // pred_check
    _
  $region3: #{linear_qnet_forward.1} parent=0 // pred_check_branch
    %11 = sbr.rel (0) target = $region5
  $region4: #{linear_qnet_forward.1} parent=0 // pred_region
    _
  $region5: #{linear_qnet_forward.1} parent=0 // pred_fallthru
    _
  // Predicated region
  $region6: #{linear_qnet_forward.1} parent=0 // pred_check
    _
  $region7: #{linear_qnet_forward.1} parent=0 // pred_check_branch
    %13 = sbr.rel (0) target = $region9
  $region8: #{linear_qnet_forward.1} parent=0 // pred_region
    _
  $region9: #{linear_qnet_forward.1} parent=0 // pred_fallthru
    _
  // Predicated region
  $region10: #{linear_qnet_forward.1} parent=0 // pred_check
    _
  $region11: #{linear_qnet_forward.1} parent=0 // pred_check_branch
    %15 = sbr.rel (0) target = $region13
  $region12: #{linear_qnet_forward.1} parent=0 // pred_region
    _
  $region13: #{linear_qnet_forward.1} parent=0 // pred_fallthru
    _
  // Predicated region
  $region14: #{linear_qnet_forward.1} parent=0 // pred_check
    _
  $region15: #{linear_qnet_forward.1} parent=0 // pred_check_branch
    %17 = sbr.rel (0) target = $region17
  $region16: #{linear_qnet_forward.1} parent=0 // pred_region
    _
  $region17: #{linear_qnet_forward.1} parent=0 // pred_fallthru
    _
  // Predicated region
  $region18: #{linear_qnet_forward.1} parent=0 // pred_check
    _
  $region19: #{linear_qnet_forward.1} parent=0 // pred_check_branch
    %19 = sbr.rel (0) target = $region21
  $region20: #{linear_qnet_forward.1} parent=0 // pred_region
    _
  $region21: #{linear_qnet_forward.1} parent=0 // pred_fallthru
    _
  %v20 = vld [vmem:[%s0] sm:$0xff]
  %v21 = vld [vmem:[%s1] sm:$0xff]
  %v22 = vld [vmem:[%s1 + $0x8] sm:$0xff]
  %v23 = vld [vmem:[%s2] sm:$0x1]
  %v25 = vperm.slane %v23, 0
  %vm27 = vcmask 130048
  %v29 = vsel %vm27, %v20, 0
  %31 = vmatpush.msra.mxu0 0.0
  %32 = vmatpush.msra.mxu0 0.0
  %33 = vmatpush.msra.mxu0 0.0
  %34 = vmatpush.msra.mxu0 0.0
  %35 = vmatpush.msra.mxu0 0.0
  %36 = vmatpush.msra.mxu0 0.0
  %37 = vmatpush.msra.mxu0 0.0
  %38 = vmatpush.msra.mxu0 0.0
  %39 = vmatpush.msra.mxu0 0.0
  %40 = vmatpush.msra.mxu0 0.0
  %41 = vmatpush.msra.mxu0 0.0
  %42 = vmatpush.msra.mxu0 0.0
  %43 = vmatpush.msra.mxu0 0.0
  %44 = vmatpush.msra.mxu0 0.0
  %45 = vmatpush.msra.mxu0 %v22
  %46 = vmatpush.msra.mxu0 %v21
  %47 = vmatmul.f32.gmra.mxu0 %v29
  %v48 = vpop.f32.mrf.mxu0
  %v49 = vadd.f32 %v25, %v48
  %50 = vdwg.mxu0
  %v51 = vmax.f32 %v49, 0.0
  %v52 = vld [vmem:[%s3] sm:$0xff]
  %v53 = vld [vmem:[%s3 + $0x8] sm:$0xff]
  %v54 = vld [vmem:[%s3 + $0x10] sm:$0xff]
  %v55 = vld [vmem:[%s3 + $0x18] sm:$0xff]
  %v56 = vld [vmem:[%s4] sm:$0x1]
  %v58 = vperm.slane %v56, 0
  %vm60 = vcmask 261120
  %v62 = vsel %vm60, %v51, 0
  %64 = vmatpush.msra.mxu0 0.0
  %65 = vmatpush.msra.mxu0 0.0
  %66 = vmatpush.msra.mxu0 0.0
  %67 = vmatpush.msra.mxu0 0.0
  %68 = vmatpush.msra.mxu0 0.0
  %69 = vmatpush.msra.mxu0 0.0
  %70 = vmatpush.msra.mxu0 0.0
  %71 = vmatpush.msra.mxu0 0.0
  %72 = vmatpush.msra.mxu0 0.0
  %73 = vmatpush.msra.mxu0 0.0
  %74 = vmatpush.msra.mxu0 0.0
  %75 = vmatpush.msra.mxu0 0.0
  %76 = vmatpush.msra.mxu0 %v55
  %77 = vmatpush.msra.mxu0 %v54
  %78 = vmatpush.msra.mxu0 %v53
  %79 = vmatpush.msra.mxu0 %v52
  %80 = vmatmul.f32.gmra.mxu0 %v62
  %v81 = vpop.f32.mrf.mxu0
  %v82 = vadd.f32 %v58, %v81
  %83 = vdwg.mxu0
  %84 = vst [vmem:[%s5] sm:$0xff] %v82
  // Predicated region
  $region22: #{linear_qnet_forward.1} parent=0 // pred_check
    _
  $region23: #{linear_qnet_forward.1} parent=0 // pred_check_branch
    %86 = sbr.rel (0) target = $region25
  $region24: #{linear_qnet_forward.1} parent=0 // pred_region
    _
  $region25: #{linear_qnet_forward.1} parent=0 // pred_fallthru
    _
  // Predicated region
  $region26: #{linear_qnet_forward.1} parent=0 // pred_check
    _
  $region27: #{linear_qnet_forward.1} parent=0 // pred_check_branch
    %88 = sbr.rel (0) target = $region29
  $region28: #{linear_qnet_forward.1} parent=0 // pred_region
    _
  $region29: #{linear_qnet_forward.1} parent=0 // pred_fallthru
    _

</llo_original>
